<compile_context>
chip_gen: v7x
topology: tpu7x:2x2x1
jax: 0.10.0
libtpu: 0.0.40
codegen_flags: <defaults>
</compile_context>

<pallas_src>
import functools
import math

import jax
import jax.numpy as jnp
from jax.experimental import pallas as pl
from jax.experimental.pallas import tpu as pltpu

BN_EPS = 1e-5  # torch.nn.BatchNorm1d default eps
_MIB = 1024 * 1024


def _round_up(x, m):
    return ((x + m - 1) // m) * m


def _cdiv(a, b):
    return -(-a // b)


# ---------------------------------------------------------------------------
# Kernel
# ---------------------------------------------------------------------------
def _arcface_head_kernel(x_ref, w_ref, b_ref, out_ref, *, inv_hw, c_chunk):
    """Fused AdaptiveAvgPool2d(1) + Dropout(p=0) + Linear + BatchNorm1d (inference).

    x_ref  : (TB, C, HW)   feature-map tile, native dtype (bf16/f32), C on sublanes
    w_ref  : (C, FC_pad)   folded weight  (BN scale applied), f32
    b_ref  : (1, FC_pad)   folded bias    (fc bias + BN shift), f32
    out_ref: (TB, FC_pad)  f32 embedding tile
    """
    tb, C, _ = x_ref.shape
    fc = out_ref.shape[-1]
    acc = jnp.zeros((tb, fc), jnp.float32)          # small, vreg-resident
    # Chunk the channel (sublane) axis so the f32 cast never materializes a
    # tile-sized temporary; pool + matmul accumulate per chunk in f32.
    for c0 in range(0, C, c_chunk):
        xb = x_ref[:, c0:c0 + c_chunk, :].astype(jnp.float32)   # (TB, ck, HW) f32
        pooled = jnp.sum(xb, axis=-1) * inv_hw                  # (TB, ck), C on lanes
        acc = acc + jnp.dot(pooled, w_ref[c0:c0 + c_chunk, :],
                            preferred_element_type=jnp.float32)
    # Dropout(p=0.0) is identity; Linear bias + BN shift folded into b_ref.
    out_ref[...] = acc + b_ref[...]


# ---------------------------------------------------------------------------
# Planning / params
# ---------------------------------------------------------------------------
def _vmem_capacity_bytes():
    """Physical VMEM of this TPU generation (fallback: v7x's 64 MiB, conservative)."""
    try:
        info = pltpu.get_tpu_info()
        cap = getattr(info, "vmem_capacity_bytes", None)
        if cap:
            return int(cap)
    except Exception:
        pass
    return 64 * _MIB


def _pick_c_chunk(C):
    for ck in (256, 128, 64, 32, 16, 8):
        if C % ck == 0:
            return ck
    return C  # odd channel count: single whole-C chunk


def _plan(B, C, HW, in_dtype, fc_pad, w_bytes_vmem):
    """Pick batch tile, channel chunk and vmem limit for this TPU generation."""
    cap = _vmem_capacity_bytes()
    budget = cap - 16 * _MIB                          # headroom for compiler scratch
    dsize = jnp.dtype(in_dtype).itemsize
    sub = (4 // max(1, dsize)) * 8                    # sublanes/vreg: f32->8, bf16->16
    lane_tiles = _cdiv(HW, 128)
    per_row_x = _cdiv(C, sub) * lane_tiles * 4096     # tiled VMEM bytes per batch row
    c_chunk = _pick_c_chunk(C)
    per_row_tmp = _cdiv(c_chunk, 8) * lane_tiles * 4096   # f32 pooling temp per row
    per_row_out = 2 * fc_pad * 4                          # double-buffered out row
    avail = budget - 2 * w_bytes_vmem - 2 * _MIB          # weights (worst 2x) + misc
    denom = 2 * per_row_x + per_row_tmp + per_row_out     # x block double-buffered
    tb = max(8, (avail // denom) // 8 * 8)
    # Keep >=4 grid steps when the batch allows: megacore split (2-TC parts) and
    # prefetch/compute overlap both need more than one tile.
    tb = min(tb, max(8, _round_up(_cdiv(B, 4), 8)))
    tb = min(tb, _round_up(B, 8), 512)
    # Prefer a tile that divides the (8-aligned) batch so the batch-pad copy is
    # skipped whenever possible.
    b8 = _round_up(B, 8)
    while tb > 8 and b8 % tb != 0:
        tb -= 8
    vmem_limit = min(cap - 12 * _MIB, 120 * _MIB)     # ~52 MiB on v7x, ~116 MiB on v5e/v6e
    return tb, c_chunk, vmem_limit


def prepare_params(params):
    """One-time prep: fold BN (inference) + fc bias into the Linear weights,
    pre-transpose to (C, fc_dim); pad only the small fc dim to a lane multiple."""
    fc_dim, in_features = params["fc_weight"].shape
    scale = params["bn_gamma"] / jnp.sqrt(params["bn_running_var"] + BN_EPS)
    w_folded = (params["fc_weight"].astype(jnp.float32) * scale[:, None]).T   # (C, fc_dim)
    b_folded = (params["fc_bias"] - params["bn_running_mean"]) * scale + params["bn_beta"]

    fc_pad = _round_up(fc_dim, 128)   # lane-dense stores; C stays unpadded
    w_p = jnp.zeros((in_features, fc_pad), jnp.float32).at[:, :fc_dim].set(w_folded)
    b_p = jnp.zeros((1, fc_pad), jnp.float32).at[0, :fc_dim].set(
        b_folded.astype(jnp.float32))
    return {"w": w_p, "b": b_p, "fc_dim": fc_dim, "in_features": in_features}


# ---------------------------------------------------------------------------
# Forward
# ---------------------------------------------------------------------------
def arcface_forward(feat_nchw, prepared):
    """feat_nchw: (B, C, H, W) backbone feature map (bf16 recommended on the wire).
    Returns (B, fc_dim) float32 embedding == bn(fc(dropout(avgpool(feat))))."""
    B, C, H, W = feat_nchw.shape
    HW = H * W
    w_p, b_p = prepared["w"], prepared["b"]
    fc_pad = w_p.shape[1]
    fc_dim = prepared["fc_dim"]
    assert prepared["in_features"] == C

    w_bytes_vmem = _cdiv(C, 8) * _cdiv(fc_pad, 128) * 4096
    tb, c_chunk, vmem_limit = _plan(B, C, HW, feat_nchw.dtype, fc_pad, w_bytes_vmem)
    b_pad = _round_up(B, tb)

    # Metadata-only reshape (last two dims contiguous): NO transpose, NO
    # spatial/channel pad -> no extra HBM pass over the feature map.
    x = feat_nchw.reshape(B, C, HW)
    if b_pad != B:
        # Only the batch axis is ever padded; skipped entirely when B is a
        # multiple of the tile (typical serving batches).
        x = jnp.pad(x, ((0, b_pad - B), (0, 0), (0, 0)))

    kernel = functools.partial(_arcface_head_kernel, inv_hw=1.0 / HW, c_chunk=c_chunk)

    def run(single_buffer_weights):
        # Constant-index weight/bias blocks don't need double-buffering.
        const_kw = dict(pipeline_mode=pl.Buffered(1)) if single_buffer_weights else {}
        return pl.pallas_call(
            kernel,
            out_shape=jax.ShapeDtypeStruct((b_pad, fc_pad), jnp.float32),
            grid_spec=pltpu.PrefetchScalarGridSpec(
                num_scalar_prefetch=0,
                grid=(b_pad // tb,),
                in_specs=[
                    pl.BlockSpec((tb, C, HW), lambda i: (i, 0, 0)),
                    pl.BlockSpec((C, fc_pad), lambda i: (0, 0), **const_kw),
                    pl.BlockSpec((1, fc_pad), lambda i: (0, 0), **const_kw),
                ],
                out_specs=pl.BlockSpec((tb, fc_pad), lambda i: (i, 0)),
            ),
            compiler_params=pltpu.CompilerParams(
                dimension_semantics=("parallel",),   # batch tiles are independent
                vmem_limit_bytes=vmem_limit,
            ),
        )(x, w_p, b_p)

    try:
        out = run(single_buffer_weights=True)
    except Exception:
        # pipeline_mode / pl.Buffered(1) not supported on this jax build:
        # fall back to default double-buffered weight/bias blocks.
        out = run(single_buffer_weights=False)

    return out[:B, :fc_dim]


# ---------------------------------------------------------------------------
# Init + reference + demo
# ---------------------------------------------------------------------------
def init_params(key, in_features, fc_dim):
    """Init mirroring ArcFaceModel._init_params() (xavier_normal fc, BN weight 1 / bias 0)."""
    std = math.sqrt(2.0 / (in_features + fc_dim))      # xavier_normal_
    w = std * jax.random.normal(key, (fc_dim, in_features), jnp.float32)
    return {
        "fc_weight": w,                                # (fc_dim, in_features)
        "fc_bias": jnp.zeros((fc_dim,), jnp.float32),
        "bn_gamma": jnp.ones((fc_dim,), jnp.float32),
        "bn_beta": jnp.zeros((fc_dim,), jnp.float32),
        "bn_running_mean": jnp.zeros((fc_dim,), jnp.float32),
        "bn_running_var": jnp.ones((fc_dim,), jnp.float32),
    }


def _reference(feat_nchw, params):
    """Pure-JAX reference for correctness checking (matches PyTorch forward)."""
    B = feat_nchw.shape[0]
    pooled = jnp.mean(feat_nchw.astype(jnp.float32), axis=(2, 3)).reshape(B, -1)
    y = pooled @ params["fc_weight"].T + params["fc_bias"]
    inv = 1.0 / jnp.sqrt(params["bn_running_var"] + BN_EPS)
    return (y - params["bn_running_mean"]) * inv * params["bn_gamma"] + params["bn_beta"]


if __name__ == "__main__":
    # Small shapes: batch=2, backbone channels=16, spatial 8x8 feature map, fc_dim=32.
    B, C, H, W = 2, 16, 8, 8
    FC_DIM = 32

    key = jax.random.PRNGKey(0)
    k_feat, k_w, k_m, k_v = jax.random.split(key, 4)

    # Backbone feature map, bf16 on the wire (feature bytes dominate HBM traffic).
    feat = jax.random.normal(k_feat, (B, C, H, W), jnp.float32).astype(jnp.bfloat16)

    params = init_params(k_w, in_features=C, fc_dim=FC_DIM)
    # Non-trivial running stats (as after training) so the BN fold is exercised.
    params["bn_running_mean"] = 0.1 * jax.random.normal(k_m, (FC_DIM,), jnp.float32)
    params["bn_running_var"] = 1.0 + 0.5 * jax.random.uniform(k_v, (FC_DIM,), jnp.float32)

    prepared = prepare_params(params)                  # one-time fold / pad

    out = arcface_forward(feat, prepared)
    out = jax.block_until_ready(out)

    ref = _reference(feat, params)                     # same bf16 inputs, f32 math
    assert out.shape == (B, FC_DIM)
    err = jnp.max(jnp.abs(out - ref))
    assert jnp.allclose(out, ref, atol=1e-4, rtol=1e-4), f"mismatch vs reference, max err={err}"

    print("KERNEL_OK")
</pallas_src>

<mosaic_0001>
module attributes {stable_mosaic.version = 11 : i64} {
  func.func @_arcface_head_kernel(%arg0: i32, %arg1: memref<8x16x64xbf16, #tpu.memory_space<vmem>>, %arg2: memref<16x128xf32, #tpu.memory_space<vmem>>, %arg3: memref<1x128xf32, #tpu.memory_space<vmem>>, %arg4: memref<8x128xf32, #tpu.memory_space<vmem>>) attributes {dimension_semantics = [#tpu.dimension_semantics<parallel>], iteration_bounds = array<i64: 1>, scalar_prefetch = 0 : i64, scratch_operands = 0 : i64, tpu.core_type = #tpu.core_type<tc>, window_params = [{transform_indices = @transform_0, window_bounds = array<i64: 8, 16, 64>}, {pipeline_mode = #tpu.pipeline_mode<synchronous>, transform_indices = @transform_1, window_bounds = array<i64: 16, 128>}, {pipeline_mode = #tpu.pipeline_mode<synchronous>, transform_indices = @transform_2, window_bounds = array<i64: 1, 128>}, {transform_indices = @transform_3, window_bounds = array<i64: 8, 128>}]} {
    %cst = arith.constant 0.000000e+00 : f32
    %0 = vector.broadcast %cst : f32 to vector<8x128xf32>
    %c0 = arith.constant 0 : index
    %c0_0 = arith.constant 0 : index
    %c0_1 = arith.constant 0 : index
    %1 = vector.load %arg1[%c0, %c0_0, %c0_1] : memref<8x16x64xbf16, #tpu.memory_space<vmem>>, vector<8x16x64xbf16>
    %2 = arith.extf %1 : vector<8x16x64xbf16> to vector<8x16x64xf32>
    %cst_2 = arith.constant dense<0.000000e+00> : vector<8x16xf32>
    %3 = vector.multi_reduction <add>, %2, %cst_2 [2] : vector<8x16x64xf32> to vector<8x16xf32>
    %cst_3 = arith.constant 1.562500e-02 : f32
    %4 = vector.broadcast %cst_3 : f32 to vector<8x16xf32>
    %5 = arith.mulf %3, %4 : vector<8x16xf32>
    %c0_4 = arith.constant 0 : index
    %c0_5 = arith.constant 0 : index
    %6 = vector.load %arg2[%c0_4, %c0_5] : memref<16x128xf32, #tpu.memory_space<vmem>>, vector<16x128xf32>
    %cst_6 = arith.constant dense<0.000000e+00> : vector<8x128xf32>
    %7 = tpu.matmul %5, %6, %cst_6 {dimension_numbers = #tpu.dot_dimension_numbers<[1], [0], [0], [1], [0, 0, 1, 1], [], []>} : vector<8x16xf32>, vector<16x128xf32>, vector<8x128xf32> -> vector<8x128xf32>
    %8 = arith.addf %0, %7 : vector<8x128xf32>
    %c0_7 = arith.constant 0 : index
    %c0_8 = arith.constant 0 : index
    %9 = vector.load %arg3[%c0_7, %c0_8] : memref<1x128xf32, #tpu.memory_space<vmem>>, vector<1x128xf32>
    %10 = vector.broadcast %9 : vector<1x128xf32> to vector<8x128xf32>
    %11 = arith.addf %8, %10 : vector<8x128xf32>
    %c0_9 = arith.constant 0 : index
    %c0_10 = arith.constant 0 : index
    %12 = vector.load %arg4[%c0_9, %c0_10] : memref<8x128xf32, #tpu.memory_space<vmem>>, vector<8x128xf32>
    tpu.vector_store %arg4[%c0_9, %c0_10], %11 {strides = array<i32>} : memref<8x128xf32, #tpu.memory_space<vmem>>, vector<8x128xf32>,
    return
  }
  func.func @transform_0(%arg0: i32) -> (i32, i32, i32) {
    %c0_i32 = arith.constant 0 : i32
    %c0_i32_0 = arith.constant 0 : i32
    %c0_i32_1 = arith.constant 0 : i32
    return %arg0, %c0_i32, %c0_i32_0 : i32, i32, i32
  }
  func.func @transform_1(%arg0: i32) -> (i32, i32) {
    %c0_i32 = arith.constant 0 : i32
    %c0_i32_0 = arith.constant 0 : i32
    %c0_i32_1 = arith.constant 0 : i32
    return %c0_i32, %c0_i32_0 : i32, i32
  }
  func.func @transform_2(%arg0: i32) -> (i32, i32) {
    %c0_i32 = arith.constant 0 : i32
    %c0_i32_0 = arith.constant 0 : i32
    %c0_i32_1 = arith.constant 0 : i32
    return %c0_i32, %c0_i32_0 : i32, i32
  }
  func.func @transform_3(%arg0: i32) -> (i32, i32) {
    %c0_i32 = arith.constant 0 : i32
    %c0_i32_0 = arith.constant 0 : i32
    return %arg0, %c0_i32 : i32, i32
  }
}

module attributes {stable_mosaic.version = 11 : i64} {
  func.func @_arcface_head_kernel(%arg0: i32, %arg1: memref<8x16x64xbf16, #tpu.memory_space<vmem>>, %arg2: memref<16x128xf32, #tpu.memory_space<vmem>>, %arg3: memref<1x128xf32, #tpu.memory_space<vmem>>, %arg4: memref<8x128xf32, #tpu.memory_space<vmem>>) attributes {dimension_semantics = [#tpu.dimension_semantics<parallel>], iteration_bounds = array<i64: 1>, scalar_prefetch = 0 : i64, scratch_operands = 0 : i64, tpu.core_type = #tpu.core_type<tc>, window_params = [{transform_indices = @transform_0, window_bounds = array<i64: 8, 16, 64>}, {pipeline_mode = #tpu.pipeline_mode<synchronous>, transform_indices = @transform_1, window_bounds = array<i64: 16, 128>}, {pipeline_mode = #tpu.pipeline_mode<synchronous>, transform_indices = @transform_2, window_bounds = array<i64: 1, 128>}, {transform_indices = @transform_3, window_bounds = array<i64: 8, 128>}]} {
    %cst = arith.constant 0.000000e+00 : f32
    %0 = vector.broadcast %cst : f32 to vector<8x128xf32>
    %c0 = arith.constant 0 : index
    %c0_0 = arith.constant 0 : index
    %c0_1 = arith.constant 0 : index
    %1 = vector.load %arg1[%c0, %c0_0, %c0_1] : memref<8x16x64xbf16, #tpu.memory_space<vmem>>, vector<8x16x64xbf16>
    %2 = arith.extf %1 : vector<8x16x64xbf16> to vector<8x16x64xf32>
    %cst_2 = arith.constant dense<0.000000e+00> : vector<8x16xf32>
    %3 = vector.multi_reduction <add>, %2, %cst_2 [2] : vector<8x16x64xf32> to vector<8x16xf32>
    %cst_3 = arith.constant 1.562500e-02 : f32
    %4 = vector.broadcast %cst_3 : f32 to vector<8x16xf32>
    %5 = arith.mulf %3, %4 : vector<8x16xf32>
    %c0_4 = arith.constant 0 : index
    %c0_5 = arith.constant 0 : index
    %6 = vector.load %arg2[%c0_4, %c0_5] : memref<16x128xf32, #tpu.memory_space<vmem>>, vector<16x128xf32>
    %cst_6 = arith.constant dense<0.000000e+00> : vector<8x128xf32>
    %7 = tpu.matmul %5, %6, %cst_6 {dimension_numbers = #tpu.dot_dimension_numbers<[1], [0], [0], [1], [0, 0, 1, 1], [], []>} : vector<8x16xf32>, vector<16x128xf32>, vector<8x128xf32> -> vector<8x128xf32>
    %8 = arith.addf %0, %7 : vector<8x128xf32>
    %c0_7 = arith.constant 0 : index
    %c0_8 = arith.constant 0 : index
    %9 = vector.load %arg3[%c0_7, %c0_8] : memref<1x128xf32, #tpu.memory_space<vmem>>, vector<1x128xf32>
    %10 = vector.broadcast %9 : vector<1x128xf32> to vector<8x128xf32>
    %11 = arith.addf %8, %10 : vector<8x128xf32>
    %c0_9 = arith.constant 0 : index
    %c0_10 = arith.constant 0 : index
    %12 = vector.load %arg4[%c0_9, %c0_10] : memref<8x128xf32, #tpu.memory_space<vmem>>, vector<8x128xf32>
    tpu.vector_store %arg4[%c0_9, %c0_10], %11 {strides = array<i32>} : memref<8x128xf32, #tpu.memory_space<vmem>>, vector<8x128xf32>,
    return
  }
  func.func @transform_0(%arg0: i32) -> (i32, i32, i32) {
    %c0_i32 = arith.constant 0 : i32
    %c0_i32_0 = arith.constant 0 : i32
    %c0_i32_1 = arith.constant 0 : i32
    return %arg0, %c0_i32, %c0_i32_0 : i32, i32, i32
  }
  func.func @transform_1(%arg0: i32) -> (i32, i32) {
    %c0_i32 = arith.constant 0 : i32
    %c0_i32_0 = arith.constant 0 : i32
    %c0_i32_1 = arith.constant 0 : i32
    return %c0_i32, %c0_i32_0 : i32, i32
  }
  func.func @transform_2(%arg0: i32) -> (i32, i32) {
    %c0_i32 = arith.constant 0 : i32
    %c0_i32_0 = arith.constant 0 : i32
    %c0_i32_1 = arith.constant 0 : i32
    return %c0_i32, %c0_i32_0 : i32, i32
  }
  func.func @transform_3(%arg0: i32) -> (i32, i32) {
    %c0_i32 = arith.constant 0 : i32
    %c0_i32_0 = arith.constant 0 : i32
    return %arg0, %c0_i32 : i32, i32
  }
}

</mosaic_0001>

<llo_original>
// kernel: tpu_custom_call.1
$region0: #{tpu_custom_call.1}
  #allocation0 [shape = 'u32[]', space=smem, size = 0x4, offset = 0x4, fixed_abs, tag = 'smem constant byte address 0x4 - core index']
  #allocation1 [shape = 'u32[144,128]{1,0:T(1,128)}', space=vmem, size = 0x12000, scoped, tag = 'internal scratch']
  %s0 = inlined_call_operand.hbm [shape: bf16[8,16,64], index: 0, kind: input, shape index: {}]
  %s1 = inlined_call_operand.hbm [shape: f32[16,128], index: 1, kind: input, shape index: {}]
  %s2 = inlined_call_operand.vmem [shape: f32[1,128], index: 2, kind: input, shape index: {}]
  %s3 = inlined_call_operand.hbm [shape: f32[8,128], index: 3, kind: output, shape index: {}]
  %s4 = sld [smem:[#allocation0]]
  $region30: #{tpu_custom_call.1} parent=0
    _
  %s6 = ssub.s32 1, %s4
  %s7 = scalar_select 0, %s6, %s4
  $region1: #{tpu_custom_call.1} parent=0
    #allocation2 [shape = 'u8[32768]{0}', space=vmem, size = 0x8000, scoped, tag = 'input window, operand 0, single buffered']
    #allocation3 [shape = 's32[1]{0}', space=sflag, size = 0x4, scoped, tag = 'scoped memory for tpu_custom_call.1']
    #allocation4 [shape = 's32[1]{0}', space=sflag, size = 0x4, scoped, tag = 'scoped memory for tpu_custom_call.1']
    #allocation5 [shape = 'u8[8192]{0}', space=vmem, size = 0x2000, scoped, tag = 'input window, operand 1, single buffered']
    #allocation6 [shape = 's32[1]{0}', space=sflag, size = 0x4, scoped, tag = 'scoped memory for tpu_custom_call.1']
    #allocation7 [shape = 'u8[4096]{0}', space=vmem, size = 0x1000, scoped, tag = 'output window, operand 0, single buffered']
    %8 = vsyncpa [#allocation3], 0
    %9 = vsyncpa [#allocation6], 0
    %10 = vsyncpa [#allocation4], 0
    // Predicated region
    $region2: #{tpu_custom_call.1} parent=1 // pred_check
      _
    $region3: #{tpu_custom_call.1} parent=1 // pred_check_branch
      %12 = sbr.rel (0) target = $region5
    $region4: #{tpu_custom_call.1} parent=1 // pred_region
      %s14 = ssub.s32 1024, 1024
      %15 = vsyncadd [#allocation3], %s14
      %s16 = sshll.u32 [#allocation2], 4
      %s17 = int_to_ptr.vmem [resolvable:$true] %s16
      %22 = dma.hbm_to_vmem [thread:$0]  %s0, 1024, %s17, [#allocation3], 64, 64, 4
    $region5: #{tpu_custom_call.1} parent=1 // pred_fallthru
      _
    // Predicated region
    $region6: #{tpu_custom_call.1} parent=1 // pred_check
      _
    $region7: #{tpu_custom_call.1} parent=1 // pred_check_branch
      %24 = sbr.rel (0) target = $region9
    $region8: #{tpu_custom_call.1} parent=1 // pred_region
      %s26 = ssub.s32 256, 256
      %27 = vsyncadd [#allocation6], %s26
      %s28 = sshll.u32 [#allocation5], 4
      %s29 = int_to_ptr.vmem [resolvable:$true] %s28
      %34 = dma.hbm_to_vmem [thread:$0]  %s1, 256, %s29, [#allocation6], 128, 128, 8
    $region9: #{tpu_custom_call.1} parent=1 // pred_fallthru
      _
    // Predicated region
    $region10: #{tpu_custom_call.1} parent=1 // pred_check
      _
    $region11: #{tpu_custom_call.1} parent=1 // pred_check_branch
      %36 = sbr.rel (0) target = $region13
    $region12: #{tpu_custom_call.1} parent=1 // pred_region
      _
    $region13: #{tpu_custom_call.1} parent=1 // pred_fallthru
      _
    // Predicated region
    $region14: #{tpu_custom_call.1} parent=1 // pred_check
      _
    $region15: #{tpu_custom_call.1} parent=1 // pred_check_branch
      %38 = sbr.rel (0) target = $region17
    $region16: #{tpu_custom_call.1} parent=1 // pred_region
      %39 = dma.done [#allocation3], 1024
    $region17: #{tpu_custom_call.1} parent=1 // pred_fallthru
      _
    // Predicated region
    $region18: #{tpu_custom_call.1} parent=1 // pred_check
      _
    $region19: #{tpu_custom_call.1} parent=1 // pred_check_branch
      %41 = sbr.rel (0) target = $region21
    $region20: #{tpu_custom_call.1} parent=1 // pred_region
      %42 = dma.done [#allocation6], 256
    $region21: #{tpu_custom_call.1} parent=1 // pred_fallthru
      _
    %v43 = vld [vmem:[#allocation2] sm:$0xf]
    %v44 = vld [vmem:[#allocation2 + $0x4] sm:$0xf]
    %v45 = vld [vmem:[#allocation2 + $0x8] sm:$0xf]
    %v46 = vld [vmem:[#allocation2 + $0xc] sm:$0xf]
    %v47 = vld [vmem:[#allocation2 + $0x10] sm:$0xf]
    %v48 = vld [vmem:[#allocation2 + $0x14] sm:$0xf]
    %v49 = vld [vmem:[#allocation2 + $0x18] sm:$0xf]
    %v50 = vld [vmem:[#allocation2 + $0x1c] sm:$0xf]
    %v51 = vld [vmem:[#allocation2 + $0x20] sm:$0xf]
    %v52 = vld [vmem:[#allocation2 + $0x24] sm:$0xf]
    %v53 = vld [vmem:[#allocation2 + $0x28] sm:$0xf]
    %v54 = vld [vmem:[#allocation2 + $0x2c] sm:$0xf]
    %v55 = vld [vmem:[#allocation2 + $0x30] sm:$0xf]
    %v56 = vld [vmem:[#allocation2 + $0x34] sm:$0xf]
    %v57 = vld [vmem:[#allocation2 + $0x38] sm:$0xf]
    %v58 = vld [vmem:[#allocation2 + $0x3c] sm:$0xf]
    %v59 = vunpack.c.l.bf16 %v43
    %v60 = vunpack.c.l.bf16 %v44
    %v61 = vunpack.c.l.bf16 %v45
    %v62 = vunpack.c.l.bf16 %v46
    %v63 = vunpack.c.l.bf16 %v47
    %v64 = vunpack.c.l.bf16 %v48
    %v65 = vunpack.c.l.bf16 %v49
    %v66 = vunpack.c.l.bf16 %v50
    %v67 = vunpack.c.l.bf16 %v51
    %v68 = vunpack.c.l.bf16 %v52
    %v69 = vunpack.c.l.bf16 %v53
    %v70 = vunpack.c.l.bf16 %v54
    %v71 = vunpack.c.l.bf16 %v55
    %v72 = vunpack.c.l.bf16 %v56
    %v73 = vunpack.c.l.bf16 %v57
    %v74 = vunpack.c.l.bf16 %v58
    %vm75 = vcmask 523264
    %v76 = vsel %vm75, %v59, 0.0
    %77 = vadd.xlane.f32.xlu0 %v76
    %v78 = vpop.xlane.xlu0 %77
    %v79 = vsel %vm75, %v60, 0.0
    %80 = vadd.xlane.f32.xlu0 %v79
    %v81 = vpop.xlane.xlu0 %80
    %v82 = vsel %vm75, %v61, 0.0
    %83 = vadd.xlane.f32.xlu0 %v82
    %v84 = vpop.xlane.xlu0 %83
    %v85 = vsel %vm75, %v62, 0.0
    %86 = vadd.xlane.f32.xlu0 %v85
    %v87 = vpop.xlane.xlu0 %86
    %v88 = vsel %vm75, %v63, 0.0
    %89 = vadd.xlane.f32.xlu0 %v88
    %v90 = vpop.xlane.xlu0 %89
    %v91 = vsel %vm75, %v64, 0.0
    %92 = vadd.xlane.f32.xlu0 %v91
    %v93 = vpop.xlane.xlu0 %92
    %v94 = vsel %vm75, %v65, 0.0
    %95 = vadd.xlane.f32.xlu0 %v94
    %v96 = vpop.xlane.xlu0 %95
    %v97 = vsel %vm75, %v66, 0.0
    %98 = vadd.xlane.f32.xlu0 %v97
    %v99 = vpop.xlane.xlu0 %98
    %v100 = vsel %vm75, %v67, 0.0
    %101 = vadd.xlane.f32.xlu0 %v100
    %v102 = vpop.xlane.xlu0 %101
    %v103 = vsel %vm75, %v68, 0.0
    %104 = vadd.xlane.f32.xlu0 %v103
    %v105 = vpop.xlane.xlu0 %104
    %v106 = vsel %vm75, %v69, 0.0
    %107 = vadd.xlane.f32.xlu0 %v106
    %v108 = vpop.xlane.xlu0 %107
    %v109 = vsel %vm75, %v70, 0.0
    %110 = vadd.xlane.f32.xlu0 %v109
    %v111 = vpop.xlane.xlu0 %110
    %v112 = vsel %vm75, %v71, 0.0
    %113 = vadd.xlane.f32.xlu0 %v112
    %v114 = vpop.xlane.xlu0 %113
    %v115 = vsel %vm75, %v72, 0.0
    %116 = vadd.xlane.f32.xlu0 %v115
    %v117 = vpop.xlane.xlu0 %116
    %v118 = vsel %vm75, %v73, 0.0
    %119 = vadd.xlane.f32.xlu0 %v118
    %v120 = vpop.xlane.xlu0 %119
    %v121 = vsel %vm75, %v74, 0.0
    %122 = vadd.xlane.f32.xlu0 %v121
    %v123 = vpop.xlane.xlu0 %122
    %v124 = vmul.f32 %v78, 0.015625
    %v125 = vmul.f32 %v81, 0.015625
    %v126 = vmul.f32 %v84, 0.015625
    %v127 = vmul.f32 %v87, 0.015625
    %v128 = vmul.f32 %v90, 0.015625
    %v129 = vmul.f32 %v93, 0.015625
    %v130 = vmul.f32 %v96, 0.015625
    %v131 = vmul.f32 %v99, 0.015625
    %v132 = vmul.f32 %v102, 0.015625
    %v133 = vmul.f32 %v105, 0.015625
    %v134 = vmul.f32 %v108, 0.015625
    %v135 = vmul.f32 %v111, 0.015625
    %v136 = vmul.f32 %v114, 0.015625
    %v137 = vmul.f32 %v117, 0.015625
    %v138 = vmul.f32 %v120, 0.015625
    %v139 = vmul.f32 %v123, 0.015625
    %v140 = vld [vmem:[#allocation5] sm:$0xff]
    %v141 = vld [vmem:[#allocation5 + $0x8] sm:$0xff]
    %v142 = vld [vmem:[%s2] sm:$0x1]
    %v144 = vlaneseq
    %v145 = vshrl.u32 %v144, 7
    %v146 = vsub.s32 0, %v145
    %v147 = vrot.slane %v142, %v146
    %v165 = vlaneseq
    %v166 = vand.u32 %v165, 127
    %v167 = vlaneseq
    %v168 = vshrl.u32 %v167, 7
    %v169 = vsub.s32 %v166, %v168
    %v170 = vrot.slane %v124, %v169
    %v171 = vadd.s32 %v166, 4294967288
    %v172 = vlaneseq
    %v173 = vshrl.u32 %v172, 7
    %v174 = vsub.s32 %v171, %v173
    %v175 = vrot.slane %v125, %v174
    %vm176 = vcmask 130112
    %v177 = vsel %vm176, %v175, %v170
    %v178 = vlaneseq
    %v179 = vshrl.u32 %v178, 7
    %v180 = vsub.s32 %v166, %v179
    %v181 = vrot.slane %v126, %v180
    %v182 = vlaneseq
    %v183 = vshrl.u32 %v182, 7
    %v184 = vsub.s32 %v171, %v183
    %v185 = vrot.slane %v127, %v184
    %v186 = vsel %vm176, %v185, %v181
    %v187 = vlaneseq
    %v188 = vshrl.u32 %v187, 7
    %v189 = vsub.s32 %v166, %v188
    %v190 = vrot.slane %v128, %v189
    %v191 = vlaneseq
    %v192 = vshrl.u32 %v191, 7
    %v193 = vsub.s32 %v171, %v192
    %v194 = vrot.slane %v129, %v193
    %v195 = vsel %vm176, %v194, %v190
    %v196 = vlaneseq
    %v197 = vshrl.u32 %v196, 7
    %v198 = vsub.s32 %v166, %v197
    %v199 = vrot.slane %v130, %v198
    %v200 = vlaneseq
    %v201 = vshrl.u32 %v200, 7
    %v202 = vsub.s32 %v171, %v201
    %v203 = vrot.slane %v131, %v202
    %v204 = vsel %vm176, %v203, %v199
    %v205 = vlaneseq
    %v206 = vshrl.u32 %v205, 7
    %v207 = vsub.s32 %v166, %v206
    %v208 = vrot.slane %v132, %v207
    %v209 = vlaneseq
    %v210 = vshrl.u32 %v209, 7
    %v211 = vsub.s32 %v171, %v210
    %v212 = vrot.slane %v133, %v211
    %v213 = vsel %vm176, %v212, %v208
    %v214 = vlaneseq
    %v215 = vshrl.u32 %v214, 7
    %v216 = vsub.s32 %v166, %v215
    %v217 = vrot.slane %v134, %v216
    %v218 = vlaneseq
    %v219 = vshrl.u32 %v218, 7
    %v220 = vsub.s32 %v171, %v219
    %v221 = vrot.slane %v135, %v220
    %v222 = vsel %vm176, %v221, %v217
    %v223 = vlaneseq
    %v224 = vshrl.u32 %v223, 7
    %v225 = vsub.s32 %v166, %v224
    %v226 = vrot.slane %v136, %v225
    %v227 = vlaneseq
    %v228 = vshrl.u32 %v227, 7
    %v229 = vsub.s32 %v171, %v228
    %v230 = vrot.slane %v137, %v229
    %v231 = vsel %vm176, %v230, %v226
    %v232 = vlaneseq
    %v233 = vshrl.u32 %v232, 7
    %v234 = vsub.s32 %v166, %v233
    %v235 = vrot.slane %v138, %v234
    %v236 = vlaneseq
    %v237 = vshrl.u32 %v236, 7
    %v238 = vsub.s32 %v171, %v237
    %v239 = vrot.slane %v139, %v238
    %v240 = vsel %vm176, %v239, %v235
    %vm241 = vcmask 1041409
    %v242 = vsel %vm241, %v186, %v177
    %vm243 = vcmask 1042434
    %v244 = vsel %vm243, %v195, %v242
    %vm245 = vcmask 1043459
    %v246 = vsel %vm245, %v204, %v244
    %vm247 = vcmask 1044484
    %v248 = vsel %vm247, %v213, %v246
    %vm249 = vcmask 1045509
    %v250 = vsel %vm249, %v222, %v248
    %vm251 = vcmask 1046534
    %v252 = vsel %vm251, %v231, %v250
    %vm253 = vcmask 1047559
    %v254 = vsel %vm253, %v240, %v252
    %vm255 = vcmask 130048
    %v256 = vsel %vm255, %v254, 0
    %258 = vmatprep.subr.mxu0 0.0
    %259 = vmatpush1.msra.mxu0 %v140
    %260 = vmatprep.subr.mxu0 0.0
    %261 = vmatpush1.msra.mxu0 %v141
    %262 = vmatprep.subr.mxu0 0.0
    %263 = vmatpush1.msra.mxu0 0.0
    %264 = vmatprep.subr.mxu0 0.0
    %265 = vmatpush1.msra.mxu0 0.0
    %266 = vmatprep.subr.mxu0 0.0
    %267 = vmatpush1.msra.mxu0 0.0
    %268 = vmatprep.subr.mxu0 0.0
    %269 = vmatpush1.msra.mxu0 0.0
    %270 = vmatprep.subr.mxu0 0.0
    %271 = vmatpush1.msra.mxu0 0.0
    %272 = vmatprep.subr.mxu0 0.0
    %273 = vmatpush1.msra.mxu0 0.0
    %274 = vmatprep.subr.mxu0 0.0
    %275 = vmatpush1.msra.mxu0 0.0
    %276 = vmatprep.subr.mxu0 0.0
    %277 = vmatpush1.msra.mxu0 0.0
    %278 = vmatprep.subr.mxu0 0.0
    %279 = vmatpush1.msra.mxu0 0.0
    %280 = vmatprep.subr.mxu0 0.0
    %281 = vmatpush1.msra.mxu0 0.0
    %282 = vmatprep.subr.mxu0 0.0
    %283 = vmatpush1.msra.mxu0 0.0
    %284 = vmatprep.subr.mxu0 0.0
    %285 = vmatpush1.msra.mxu0 0.0
    %286 = vmatprep.subr.mxu0 0.0
    %287 = vmatpush1.msra.mxu0 0.0
    %288 = vmatprep.subr.mxu0 0.0
    %289 = vmatpush1.msra.mxu0 0.0
    %290 = vmatprep.subr.mxu0 0.0
    %291 = vmatpush1.msra.mxu0 0.0
    %292 = vmatprep.subr.mxu0 0.0
    %293 = vmatpush1.msra.mxu0 0.0
    %294 = vmatprep.subr.mxu0 0.0
    %295 = vmatpush1.msra.mxu0 0.0
    %296 = vmatprep.subr.mxu0 0.0
    %297 = vmatpush1.msra.mxu0 0.0
    %298 = vmatprep.subr.mxu0 0.0
    %299 = vmatpush1.msra.mxu0 0.0
    %300 = vmatprep.subr.mxu0 0.0
    %301 = vmatpush1.msra.mxu0 0.0
    %302 = vmatprep.subr.mxu0 0.0
    %303 = vmatpush1.msra.mxu0 0.0
    %304 = vmatprep.subr.mxu0 0.0
    %305 = vmatpush1.msra.mxu0 0.0
    %306 = vmatprep.subr.mxu0 0.0
    %307 = vmatpush1.msra.mxu0 0.0
    %308 = vmatprep.subr.mxu0 0.0
    %309 = vmatpush1.msra.mxu0 0.0
    %310 = vmatprep.subr.mxu0 0.0
    %311 = vmatpush1.msra.mxu0 0.0
    %312 = vmatprep.subr.mxu0 0.0
    %313 = vmatpush1.msra.mxu0 0.0
    %314 = vmatprep.subr.mxu0 0.0
    %315 = vmatpush1.msra.mxu0 0.0
    %316 = vmatprep.subr.mxu0 0.0
    %317 = vmatpush1.msra.mxu0 0.0
    %318 = vmatprep.subr.mxu0 0.0
    %319 = vmatpush1.msra.mxu0 0.0
    %320 = vmatprep.subr.mxu0 0.0
    %321 = vmatpush1.msra.mxu0 0.0
    %322 = vmatprep.mubr.f32.mxu0 0.0
    %323 = vmatmul.mubr.f32.gmra.mrb[0].mxu0 %v256
    %v324 = vpop.f32.mrb[0].mxu0
    %v325 = vadd.f32 %v147, %v324
    %v326 = vpop.f32.mrb[0].mxu0
    %327 = vdwg.mxu0
    %328 = vst [vmem:[#allocation7] sm:$0xff] %v325
    // Predicated region
    $region22: #{tpu_custom_call.1} parent=1 // pred_check
      _
    $region23: #{tpu_custom_call.1} parent=1 // pred_check_branch
      %330 = sbr.rel (0) target = $region25
    $region24: #{tpu_custom_call.1} parent=1 // pred_region
      %s332 = ssub.s32 128, 128
      %333 = vsyncadd [#allocation4], %s332
      %s335 = sshll.u32 [#allocation7], 4
      %s336 = int_to_ptr.vmem [resolvable:$true] %s335
      %338 = dma.vmem_to_hbm [thread:$0]  %s336, 128, %s3, [#allocation4]
    $region25: #{tpu_custom_call.1} parent=1 // pred_fallthru
      _
    // Predicated region
    $region26: #{tpu_custom_call.1} parent=1 // pred_check
      _
    $region27: #{tpu_custom_call.1} parent=1 // pred_check_branch
      %340 = sbr.rel (0) target = $region29
    $region28: #{tpu_custom_call.1} parent=1 // pred_region
      %341 = dma.done [#allocation4], 128
    $region29: #{tpu_custom_call.1} parent=1 // pred_fallthru
      _
    %342 = vsyncpa [#allocation3], 1
    %343 = vsyncpa [#allocation6], 1
    %344 = vsyncpa [#allocation4], 1

// kernel: tpu_custom_call.1
$region0: #{tpu_custom_call.1}
  #allocation0 [shape = 'u32[]', space=smem, size = 0x4, offset = 0x4, fixed_abs, tag = 'smem constant byte address 0x4 - core index']
  #allocation1 [shape = 'u32[144,128]{1,0:T(1,128)}', space=vmem, size = 0x12000, scoped, tag = 'internal scratch']
  %s0 = inlined_call_operand.hbm [shape: bf16[8,16,64], index: 0, kind: input, shape index: {}]
  %s1 = inlined_call_operand.hbm [shape: f32[16,128], index: 1, kind: input, shape index: {}]
  %s2 = inlined_call_operand.vmem [shape: f32[1,128], index: 2, kind: input, shape index: {}]
  %s3 = inlined_call_operand.hbm [shape: f32[8,128], index: 3, kind: output, shape index: {}]
  %s4 = sld [smem:[#allocation0]]
  $region30: #{tpu_custom_call.1} parent=0
    _
  %s6 = ssub.s32 1, %s4
  %s7 = scalar_select 0, %s6, %s4
  $region1: #{tpu_custom_call.1} parent=0
    #allocation2 [shape = 'u8[32768]{0}', space=vmem, size = 0x8000, scoped, tag = 'input window, operand 0, single buffered']
    #allocation3 [shape = 's32[1]{0}', space=sflag, size = 0x4, scoped, tag = 'scoped memory for tpu_custom_call.1']
    #allocation4 [shape = 's32[1]{0}', space=sflag, size = 0x4, scoped, tag = 'scoped memory for tpu_custom_call.1']
    #allocation5 [shape = 'u8[8192]{0}', space=vmem, size = 0x2000, scoped, tag = 'input window, operand 1, single buffered']
    #allocation6 [shape = 's32[1]{0}', space=sflag, size = 0x4, scoped, tag = 'scoped memory for tpu_custom_call.1']
    #allocation7 [shape = 'u8[4096]{0}', space=vmem, size = 0x1000, scoped, tag = 'output window, operand 0, single buffered']
    %8 = vsyncpa [#allocation3], 0
    %9 = vsyncpa [#allocation6], 0
    %10 = vsyncpa [#allocation4], 0
    // Predicated region
    $region2: #{tpu_custom_call.1} parent=1 // pred_check
      _
    $region3: #{tpu_custom_call.1} parent=1 // pred_check_branch
      %12 = sbr.rel (0) target = $region5
    $region4: #{tpu_custom_call.1} parent=1 // pred_region
      %s14 = ssub.s32 1024, 1024
      %15 = vsyncadd [#allocation3], %s14
      %s16 = sshll.u32 [#allocation2], 4
      %s17 = int_to_ptr.vmem [resolvable:$true] %s16
      %22 = dma.hbm_to_vmem [thread:$0]  %s0, 1024, %s17, [#allocation3], 64, 64, 4
    $region5: #{tpu_custom_call.1} parent=1 // pred_fallthru
      _
    // Predicated region
    $region6: #{tpu_custom_call.1} parent=1 // pred_check
      _
    $region7: #{tpu_custom_call.1} parent=1 // pred_check_branch
      %24 = sbr.rel (0) target = $region9
    $region8: #{tpu_custom_call.1} parent=1 // pred_region
      %s26 = ssub.s32 256, 256
      %27 = vsyncadd [#allocation6], %s26
      %s28 = sshll.u32 [#allocation5], 4
      %s29 = int_to_ptr.vmem [resolvable:$true] %s28
      %34 = dma.hbm_to_vmem [thread:$0]  %s1, 256, %s29, [#allocation6], 128, 128, 8
    $region9: #{tpu_custom_call.1} parent=1 // pred_fallthru
      _
    // Predicated region
    $region10: #{tpu_custom_call.1} parent=1 // pred_check
      _
    $region11: #{tpu_custom_call.1} parent=1 // pred_check_branch
      %36 = sbr.rel (0) target = $region13
    $region12: #{tpu_custom_call.1} parent=1 // pred_region
      _
    $region13: #{tpu_custom_call.1} parent=1 // pred_fallthru
      _
    // Predicated region
    $region14: #{tpu_custom_call.1} parent=1 // pred_check
      _
    $region15: #{tpu_custom_call.1} parent=1 // pred_check_branch
      %38 = sbr.rel (0) target = $region17
    $region16: #{tpu_custom_call.1} parent=1 // pred_region
      %39 = dma.done [#allocation3], 1024
    $region17: #{tpu_custom_call.1} parent=1 // pred_fallthru
      _
    // Predicated region
    $region18: #{tpu_custom_call.1} parent=1 // pred_check
      _
    $region19: #{tpu_custom_call.1} parent=1 // pred_check_branch
      %41 = sbr.rel (0) target = $region21
    $region20: #{tpu_custom_call.1} parent=1 // pred_region
      %42 = dma.done [#allocation6], 256
    $region21: #{tpu_custom_call.1} parent=1 // pred_fallthru
      _
    %v43 = vld [vmem:[#allocation2] sm:$0xf]
    %v44 = vld [vmem:[#allocation2 + $0x4] sm:$0xf]
    %v45 = vld [vmem:[#allocation2 + $0x8] sm:$0xf]
    %v46 = vld [vmem:[#allocation2 + $0xc] sm:$0xf]
    %v47 = vld [vmem:[#allocation2 + $0x10] sm:$0xf]
    %v48 = vld [vmem:[#allocation2 + $0x14] sm:$0xf]
    %v49 = vld [vmem:[#allocation2 + $0x18] sm:$0xf]
    %v50 = vld [vmem:[#allocation2 + $0x1c] sm:$0xf]
    %v51 = vld [vmem:[#allocation2 + $0x20] sm:$0xf]
    %v52 = vld [vmem:[#allocation2 + $0x24] sm:$0xf]
    %v53 = vld [vmem:[#allocation2 + $0x28] sm:$0xf]
    %v54 = vld [vmem:[#allocation2 + $0x2c] sm:$0xf]
    %v55 = vld [vmem:[#allocation2 + $0x30] sm:$0xf]
    %v56 = vld [vmem:[#allocation2 + $0x34] sm:$0xf]
    %v57 = vld [vmem:[#allocation2 + $0x38] sm:$0xf]
    %v58 = vld [vmem:[#allocation2 + $0x3c] sm:$0xf]
    %v59 = vunpack.c.l.bf16 %v43
    %v60 = vunpack.c.l.bf16 %v44
    %v61 = vunpack.c.l.bf16 %v45
    %v62 = vunpack.c.l.bf16 %v46
    %v63 = vunpack.c.l.bf16 %v47
    %v64 = vunpack.c.l.bf16 %v48
    %v65 = vunpack.c.l.bf16 %v49
    %v66 = vunpack.c.l.bf16 %v50
    %v67 = vunpack.c.l.bf16 %v51
    %v68 = vunpack.c.l.bf16 %v52
    %v69 = vunpack.c.l.bf16 %v53
    %v70 = vunpack.c.l.bf16 %v54
    %v71 = vunpack.c.l.bf16 %v55
    %v72 = vunpack.c.l.bf16 %v56
    %v73 = vunpack.c.l.bf16 %v57
    %v74 = vunpack.c.l.bf16 %v58
    %vm75 = vcmask 523264
    %v76 = vsel %vm75, %v59, 0.0
    %77 = vadd.xlane.f32.xlu0 %v76
    %v78 = vpop.xlane.xlu0 %77
    %v79 = vsel %vm75, %v60, 0.0
    %80 = vadd.xlane.f32.xlu0 %v79
    %v81 = vpop.xlane.xlu0 %80
    %v82 = vsel %vm75, %v61, 0.0
    %83 = vadd.xlane.f32.xlu0 %v82
    %v84 = vpop.xlane.xlu0 %83
    %v85 = vsel %vm75, %v62, 0.0
    %86 = vadd.xlane.f32.xlu0 %v85
    %v87 = vpop.xlane.xlu0 %86
    %v88 = vsel %vm75, %v63, 0.0
    %89 = vadd.xlane.f32.xlu0 %v88
    %v90 = vpop.xlane.xlu0 %89
    %v91 = vsel %vm75, %v64, 0.0
    %92 = vadd.xlane.f32.xlu0 %v91
    %v93 = vpop.xlane.xlu0 %92
    %v94 = vsel %vm75, %v65, 0.0
    %95 = vadd.xlane.f32.xlu0 %v94
    %v96 = vpop.xlane.xlu0 %95
    %v97 = vsel %vm75, %v66, 0.0
    %98 = vadd.xlane.f32.xlu0 %v97
    %v99 = vpop.xlane.xlu0 %98
    %v100 = vsel %vm75, %v67, 0.0
    %101 = vadd.xlane.f32.xlu0 %v100
    %v102 = vpop.xlane.xlu0 %101
    %v103 = vsel %vm75, %v68, 0.0
    %104 = vadd.xlane.f32.xlu0 %v103
    %v105 = vpop.xlane.xlu0 %104
    %v106 = vsel %vm75, %v69, 0.0
    %107 = vadd.xlane.f32.xlu0 %v106
    %v108 = vpop.xlane.xlu0 %107
    %v109 = vsel %vm75, %v70, 0.0
    %110 = vadd.xlane.f32.xlu0 %v109
    %v111 = vpop.xlane.xlu0 %110
    %v112 = vsel %vm75, %v71, 0.0
    %113 = vadd.xlane.f32.xlu0 %v112
    %v114 = vpop.xlane.xlu0 %113
    %v115 = vsel %vm75, %v72, 0.0
    %116 = vadd.xlane.f32.xlu0 %v115
    %v117 = vpop.xlane.xlu0 %116
    %v118 = vsel %vm75, %v73, 0.0
    %119 = vadd.xlane.f32.xlu0 %v118
    %v120 = vpop.xlane.xlu0 %119
    %v121 = vsel %vm75, %v74, 0.0
    %122 = vadd.xlane.f32.xlu0 %v121
    %v123 = vpop.xlane.xlu0 %122
    %v124 = vmul.f32 %v78, 0.015625
    %v125 = vmul.f32 %v81, 0.015625
    %v126 = vmul.f32 %v84, 0.015625
    %v127 = vmul.f32 %v87, 0.015625
    %v128 = vmul.f32 %v90, 0.015625
    %v129 = vmul.f32 %v93, 0.015625
    %v130 = vmul.f32 %v96, 0.015625
    %v131 = vmul.f32 %v99, 0.015625
    %v132 = vmul.f32 %v102, 0.015625
    %v133 = vmul.f32 %v105, 0.015625
    %v134 = vmul.f32 %v108, 0.015625
    %v135 = vmul.f32 %v111, 0.015625
    %v136 = vmul.f32 %v114, 0.015625
    %v137 = vmul.f32 %v117, 0.015625
    %v138 = vmul.f32 %v120, 0.015625
    %v139 = vmul.f32 %v123, 0.015625
    %v140 = vld [vmem:[#allocation5] sm:$0xff]
    %v141 = vld [vmem:[#allocation5 + $0x8] sm:$0xff]
    %v142 = vld [vmem:[%s2] sm:$0x1]
    %v144 = vlaneseq
    %v145 = vshrl.u32 %v144, 7
    %v146 = vsub.s32 0, %v145
    %v147 = vrot.slane %v142, %v146
    %v165 = vlaneseq
    %v166 = vand.u32 %v165, 127
    %v167 = vlaneseq
    %v168 = vshrl.u32 %v167, 7
    %v169 = vsub.s32 %v166, %v168
    %v170 = vrot.slane %v124, %v169
    %v171 = vadd.s32 %v166, 4294967288
    %v172 = vlaneseq
    %v173 = vshrl.u32 %v172, 7
    %v174 = vsub.s32 %v171, %v173
    %v175 = vrot.slane %v125, %v174
    %vm176 = vcmask 130112
    %v177 = vsel %vm176, %v175, %v170
    %v178 = vlaneseq
    %v179 = vshrl.u32 %v178, 7
    %v180 = vsub.s32 %v166, %v179
    %v181 = vrot.slane %v126, %v180
    %v182 = vlaneseq
    %v183 = vshrl.u32 %v182, 7
    %v184 = vsub.s32 %v171, %v183
    %v185 = vrot.slane %v127, %v184
    %v186 = vsel %vm176, %v185, %v181
    %v187 = vlaneseq
    %v188 = vshrl.u32 %v187, 7
    %v189 = vsub.s32 %v166, %v188
    %v190 = vrot.slane %v128, %v189
    %v191 = vlaneseq
    %v192 = vshrl.u32 %v191, 7
    %v193 = vsub.s32 %v171, %v192
    %v194 = vrot.slane %v129, %v193
    %v195 = vsel %vm176, %v194, %v190
    %v196 = vlaneseq
    %v197 = vshrl.u32 %v196, 7
    %v198 = vsub.s32 %v166, %v197
    %v199 = vrot.slane %v130, %v198
    %v200 = vlaneseq
    %v201 = vshrl.u32 %v200, 7
    %v202 = vsub.s32 %v171, %v201
    %v203 = vrot.slane %v131, %v202
    %v204 = vsel %vm176, %v203, %v199
    %v205 = vlaneseq
    %v206 = vshrl.u32 %v205, 7
    %v207 = vsub.s32 %v166, %v206
    %v208 = vrot.slane %v132, %v207
    %v209 = vlaneseq
    %v210 = vshrl.u32 %v209, 7
    %v211 = vsub.s32 %v171, %v210
    %v212 = vrot.slane %v133, %v211
    %v213 = vsel %vm176, %v212, %v208
    %v214 = vlaneseq
    %v215 = vshrl.u32 %v214, 7
    %v216 = vsub.s32 %v166, %v215
    %v217 = vrot.slane %v134, %v216
    %v218 = vlaneseq
    %v219 = vshrl.u32 %v218, 7
    %v220 = vsub.s32 %v171, %v219
    %v221 = vrot.slane %v135, %v220
    %v222 = vsel %vm176, %v221, %v217
    %v223 = vlaneseq
    %v224 = vshrl.u32 %v223, 7
    %v225 = vsub.s32 %v166, %v224
    %v226 = vrot.slane %v136, %v225
    %v227 = vlaneseq
    %v228 = vshrl.u32 %v227, 7
    %v229 = vsub.s32 %v171, %v228
    %v230 = vrot.slane %v137, %v229
    %v231 = vsel %vm176, %v230, %v226
    %v232 = vlaneseq
    %v233 = vshrl.u32 %v232, 7
    %v234 = vsub.s32 %v166, %v233
    %v235 = vrot.slane %v138, %v234
    %v236 = vlaneseq
    %v237 = vshrl.u32 %v236, 7
    %v238 = vsub.s32 %v171, %v237
    %v239 = vrot.slane %v139, %v238
    %v240 = vsel %vm176, %v239, %v235
    %vm241 = vcmask 1041409
    %v242 = vsel %vm241, %v186, %v177
    %vm243 = vcmask 1042434
    %v244 = vsel %vm243, %v195, %v242
    %vm245 = vcmask 1043459
    %v246 = vsel %vm245, %v204, %v244
    %vm247 = vcmask 1044484
    %v248 = vsel %vm247, %v213, %v246
    %vm249 = vcmask 1045509
    %v250 = vsel %vm249, %v222, %v248
    %vm251 = vcmask 1046534
    %v252 = vsel %vm251, %v231, %v250
    %vm253 = vcmask 1047559
    %v254 = vsel %vm253, %v240, %v252
    %vm255 = vcmask 130048
    %v256 = vsel %vm255, %v254, 0
    %258 = vmatprep.subr.mxu0 0.0
    %259 = vmatpush1.msra.mxu0 %v140
    %260 = vmatprep.subr.mxu0 0.0
    %261 = vmatpush1.msra.mxu0 %v141
    %262 = vmatprep.subr.mxu0 0.0
    %263 = vmatpush1.msra.mxu0 0.0
    %264 = vmatprep.subr.mxu0 0.0
    %265 = vmatpush1.msra.mxu0 0.0
    %266 = vmatprep.subr.mxu0 0.0
    %267 = vmatpush1.msra.mxu0 0.0
    %268 = vmatprep.subr.mxu0 0.0
    %269 = vmatpush1.msra.mxu0 0.0
    %270 = vmatprep.subr.mxu0 0.0
    %271 = vmatpush1.msra.mxu0 0.0
    %272 = vmatprep.subr.mxu0 0.0
    %273 = vmatpush1.msra.mxu0 0.0
    %274 = vmatprep.subr.mxu0 0.0
    %275 = vmatpush1.msra.mxu0 0.0
    %276 = vmatprep.subr.mxu0 0.0
    %277 = vmatpush1.msra.mxu0 0.0
    %278 = vmatprep.subr.mxu0 0.0
    %279 = vmatpush1.msra.mxu0 0.0
    %280 = vmatprep.subr.mxu0 0.0
    %281 = vmatpush1.msra.mxu0 0.0
    %282 = vmatprep.subr.mxu0 0.0
    %283 = vmatpush1.msra.mxu0 0.0
    %284 = vmatprep.subr.mxu0 0.0
    %285 = vmatpush1.msra.mxu0 0.0
    %286 = vmatprep.subr.mxu0 0.0
    %287 = vmatpush1.msra.mxu0 0.0
    %288 = vmatprep.subr.mxu0 0.0
    %289 = vmatpush1.msra.mxu0 0.0
    %290 = vmatprep.subr.mxu0 0.0
    %291 = vmatpush1.msra.mxu0 0.0
    %292 = vmatprep.subr.mxu0 0.0
    %293 = vmatpush1.msra.mxu0 0.0
    %294 = vmatprep.subr.mxu0 0.0
    %295 = vmatpush1.msra.mxu0 0.0
    %296 = vmatprep.subr.mxu0 0.0
    %297 = vmatpush1.msra.mxu0 0.0
    %298 = vmatprep.subr.mxu0 0.0
    %299 = vmatpush1.msra.mxu0 0.0
    %300 = vmatprep.subr.mxu0 0.0
    %301 = vmatpush1.msra.mxu0 0.0
    %302 = vmatprep.subr.mxu0 0.0
    %303 = vmatpush1.msra.mxu0 0.0
    %304 = vmatprep.subr.mxu0 0.0
    %305 = vmatpush1.msra.mxu0 0.0
    %306 = vmatprep.subr.mxu0 0.0
    %307 = vmatpush1.msra.mxu0 0.0
    %308 = vmatprep.subr.mxu0 0.0
    %309 = vmatpush1.msra.mxu0 0.0
    %310 = vmatprep.subr.mxu0 0.0
    %311 = vmatpush1.msra.mxu0 0.0
    %312 = vmatprep.subr.mxu0 0.0
    %313 = vmatpush1.msra.mxu0 0.0
    %314 = vmatprep.subr.mxu0 0.0
    %315 = vmatpush1.msra.mxu0 0.0
    %316 = vmatprep.subr.mxu0 0.0
    %317 = vmatpush1.msra.mxu0 0.0
    %318 = vmatprep.subr.mxu0 0.0
    %319 = vmatpush1.msra.mxu0 0.0
    %320 = vmatprep.subr.mxu0 0.0
    %321 = vmatpush1.msra.mxu0 0.0
    %322 = vmatprep.mubr.f32.mxu0 0.0
    %323 = vmatmul.mubr.f32.gmra.mrb[0].mxu0 %v256
    %v324 = vpop.f32.mrb[0].mxu0
    %v325 = vadd.f32 %v147, %v324
    %v326 = vpop.f32.mrb[0].mxu0
    %327 = vdwg.mxu0
    %328 = vst [vmem:[#allocation7] sm:$0xff] %v325
    // Predicated region
    $region22: #{tpu_custom_call.1} parent=1 // pred_check
      _
    $region23: #{tpu_custom_call.1} parent=1 // pred_check_branch
      %330 = sbr.rel (0) target = $region25
    $region24: #{tpu_custom_call.1} parent=1 // pred_region
      %s332 = ssub.s32 128, 128
      %333 = vsyncadd [#allocation4], %s332
      %s335 = sshll.u32 [#allocation7], 4
      %s336 = int_to_ptr.vmem [resolvable:$true] %s335
      %338 = dma.vmem_to_hbm [thread:$0]  %s336, 128, %s3, [#allocation4]
    $region25: #{tpu_custom_call.1} parent=1 // pred_fallthru
      _
    // Predicated region
    $region26: #{tpu_custom_call.1} parent=1 // pred_check
      _
    $region27: #{tpu_custom_call.1} parent=1 // pred_check_branch
      %340 = sbr.rel (0) target = $region29
    $region28: #{tpu_custom_call.1} parent=1 // pred_region
      %341 = dma.done [#allocation4], 128
    $region29: #{tpu_custom_call.1} parent=1 // pred_fallthru
      _
    %342 = vsyncpa [#allocation3], 1
    %343 = vsyncpa [#allocation6], 1
    %344 = vsyncpa [#allocation4], 1

</llo_original>
